<compile_context>
chip_gen: v7x
topology: tpu7x:2x2x1
jax: 0.10.0
libtpu: 0.0.40
codegen_flags: <defaults>
</compile_context>

<pallas_src>
import functools

import jax
import jax.numpy as jnp
from jax import lax
from jax.experimental import pallas as pl
from jax.experimental.pallas import tpu as pltpu


def gated_attn_kernel(x_ref, wab_ref, bab_ref, wct_ref, bc_ref, out_ref):
    # x tile: (tile_n, L)
    x = x_ref[...]

    # Fused gate projection: one MXU matmul producing (tile_n, 2D) in f32.
    h = (jnp.dot(x, wab_ref[...], preferred_element_type=jnp.float32)
         + bab_ref[...])

    d = wct_ref.shape[1]
    a = jnp.tanh(h[:, :d])           # attention_a: Linear(L, D) + Tanh
    b = jax.nn.sigmoid(h[:, d:])     # attention_b: Linear(L, D) + Sigmoid
    ab = (a * b).astype(wct_ref.dtype)

    # attention_c, emitted transposed so the output store is lane-dense:
    #   out (C, tile_n) = Wc^T (C, D) . ab (tile_n, D), contracting D on both.
    out = lax.dot_general(wct_ref[...], ab, (((1,), (1,)), ((), ())),
                          preferred_element_type=jnp.float32)
    out_ref[...] = (out + bc_ref[...]).astype(out_ref.dtype)


@functools.partial(jax.jit, static_argnames=("tile_n",))
def attn_net_gated_forward(x, wa, ba, wb, bb, wc, bc, *, tile_n=256):
    """Forward pass of Attn_Net_Gated (dropout=False). Returns (A, x).

    x: (N, L); wa/wb: (L, D); ba/bb: (1, D); wc: (D, C); bc: (1, C).
    tile_n must be a multiple of 128 (sweep 256/512/1024 at large N).
    """
    if tile_n % 128 != 0:
        raise ValueError("tile_n must be a multiple of 128")
    N, L = x.shape
    D = wa.shape[1]
    C = wc.shape[1]

    # Fuse the two gate projections into one (L, 2D) weight; biases to f32.
    wab = jnp.concatenate([wa, wb], axis=1).astype(x.dtype)         # (L, 2D)
    bab = jnp.concatenate([ba, bb], axis=1).astype(jnp.float32)     # (1, 2D)
    wct = wc.T.astype(x.dtype)                                      # (C, D)
    bct = bc.T.astype(jnp.float32)                                  # (C, 1)

    # Pad N up to a multiple of tile_n; padded rows are computed then sliced off.
    n_pad = pl.cdiv(N, tile_n) * tile_n
    x_in = x if n_pad == N else jnp.pad(x, ((0, n_pad - N), (0, 0)))
    grid = (n_pad // tile_n,)

    out_t = pl.pallas_call(
        gated_attn_kernel,
        out_shape=jax.ShapeDtypeStruct((C, n_pad), x.dtype),
        grid_spec=pltpu.PrefetchScalarGridSpec(
            num_scalar_prefetch=0,
            grid=grid,
            in_specs=[
                pl.BlockSpec((tile_n, L), lambda i: (i, 0)),   # x tile (streamed)
                pl.BlockSpec((L, 2 * D), lambda i: (0, 0)),    # fused Wa|Wb (resident)
                pl.BlockSpec((1, 2 * D), lambda i: (0, 0)),    # fused ba|bb
                pl.BlockSpec((C, D), lambda i: (0, 0)),        # Wc^T
                pl.BlockSpec((C, 1), lambda i: (0, 0)),        # bc^T
            ],
            out_specs=pl.BlockSpec((C, tile_n), lambda i: (0, i)),  # lane-dense
        ),
        compiler_params=pltpu.CompilerParams(
            dimension_semantics=("parallel",)),
    )(x_in, wab, bab, wct, bct)

    A = out_t[:, :N].T.astype(x.dtype)   # (N, C), matching the PyTorch module
    # Module returns (A, x); x passes through untouched.
    return A, x


def init_params(key, L, D, n_classes, dtype=jnp.float32):
    """Deterministic synthetic init (PyTorch-Linear-like uniform bounds)."""
    k = jax.random.split(key, 6)
    la = 1.0 / jnp.sqrt(L)
    ld = 1.0 / jnp.sqrt(D)
    wa = jax.random.uniform(k[0], (L, D), dtype, -la, la)
    ba = jax.random.uniform(k[1], (1, D), dtype, -la, la)
    wb = jax.random.uniform(k[2], (L, D), dtype, -la, la)
    bb = jax.random.uniform(k[3], (1, D), dtype, -la, la)
    wc = jax.random.uniform(k[4], (D, n_classes), dtype, -ld, ld)
    bc = jax.random.uniform(k[5], (1, n_classes), dtype, -ld, ld)
    return wa, ba, wb, bb, wc, bc


def _reference(x, wa, ba, wb, bb, wc, bc):
    a = jnp.tanh(x @ wa + ba)
    b = jax.nn.sigmoid(x @ wb + bb)
    return (a * b) @ wc + bc


if __name__ == "__main__":
    # Small shapes consistent with the module: N tokens, L input feats, D hidden.
    # N is deliberately NOT a multiple of tile_n to exercise the padding path,
    # and gives a 2-step grid (both v7x TensorCores used via "parallel").
    N, L, D, n_classes = 300, 128, 64, 1
    key = jax.random.PRNGKey(0)
    kx, kp = jax.random.split(key)
    x = jax.random.normal(kx, (N, L), jnp.float32)
    wa, ba, wb, bb, wc, bc = init_params(kp, L, D, n_classes)

    A, x_out = attn_net_gated_forward(x, wa, ba, wb, bb, wc, bc, tile_n=256)
    A = jax.block_until_ready(A)
    x_out = jax.block_until_ready(x_out)

    A_ref = _reference(x, wa, ba, wb, bb, wc, bc)
    assert A.shape == (N, n_classes)
    assert x_out.shape == (N, L)
    assert jnp.allclose(A, A_ref, atol=1e-4, rtol=1e-4)
    assert jnp.array_equal(x_out, x)

    # Also exercise n_classes > 1 to cover the general (C, tile_n) output path.
    wa2, ba2, wb2, bb2, wc2, bc2 = init_params(jax.random.PRNGKey(1), L, D, 3)
    A2, _ = attn_net_gated_forward(x, wa2, ba2, wb2, bb2, wc2, bc2, tile_n=128)
    A2 = jax.block_until_ready(A2)
    A2_ref = _reference(x, wa2, ba2, wb2, bb2, wc2, bc2)
    assert A2.shape == (N, 3)
    assert jnp.allclose(A2, A2_ref, atol=1e-4, rtol=1e-4)

    # TODO(synk): dropout=True branch (nn.Dropout(0.25)) not implemented; module
    # default is dropout=False and eval-mode dropout is identity anyway.
    print("KERNEL_OK")
</pallas_src>

<mosaic_0001>
module attributes {stable_mosaic.version = 11 : i64} {
  func.func @gated_attn_kernel(%arg0: i32, %arg1: memref<256x128xf32, #tpu.memory_space<vmem>>, %arg2: memref<128x128xf32, #tpu.memory_space<vmem>>, %arg3: memref<1x128xf32, #tpu.memory_space<vmem>>, %arg4: memref<1x64xf32, #tpu.memory_space<vmem>>, %arg5: memref<1x1xf32, #tpu.memory_space<vmem>>, %arg6: memref<1x256xf32, #tpu.memory_space<vmem>>) attributes {dimension_semantics = [#tpu.dimension_semantics<parallel>], iteration_bounds = array<i64: 2>, scalar_prefetch = 0 : i64, scratch_operands = 0 : i64, tpu.core_type = #tpu.core_type<tc>, window_params = [{transform_indices = @transform_0, window_bounds = array<i64: 256, 128>}, {pipeline_mode = #tpu.pipeline_mode<synchronous>, transform_indices = @transform_1, window_bounds = array<i64: 128, 128>}, {pipeline_mode = #tpu.pipeline_mode<synchronous>, transform_indices = @transform_2, window_bounds = array<i64: 1, 128>}, {pipeline_mode = #tpu.pipeline_mode<synchronous>, transform_indices = @transform_3, window_bounds = array<i64: 1, 64>}, {pipeline_mode = #tpu.pipeline_mode<synchronous>, transform_indices = @transform_4, window_bounds = array<i64: 1, 1>}, {transform_indices = @transform_5, window_bounds = array<i64: 1, 256>}]} {
    %c0 = arith.constant 0 : index
    %c0_0 = arith.constant 0 : index
    %0 = vector.load %arg1[%c0, %c0_0] : memref<256x128xf32, #tpu.memory_space<vmem>>, vector<256x128xf32>
    %c0_1 = arith.constant 0 : index
    %c0_2 = arith.constant 0 : index
    %1 = vector.load %arg2[%c0_1, %c0_2] : memref<128x128xf32, #tpu.memory_space<vmem>>, vector<128x128xf32>
    %cst = arith.constant dense<0.000000e+00> : vector<256x128xf32>
    %2 = tpu.matmul %0, %1, %cst {dimension_numbers = #tpu.dot_dimension_numbers<[1], [0], [0], [1], [0, 0, 1, 1], [], []>} : vector<256x128xf32>, vector<128x128xf32>, vector<256x128xf32> -> vector<256x128xf32>
    %c0_3 = arith.constant 0 : index
    %c0_4 = arith.constant 0 : index
    %3 = vector.load %arg3[%c0_3, %c0_4] : memref<1x128xf32, #tpu.memory_space<vmem>>, vector<1x128xf32>
    %4 = vector.broadcast %3 : vector<1x128xf32> to vector<256x128xf32>
    %5 = arith.addf %2, %4 : vector<256x128xf32>
    %6 = vector.extract_strided_slice %5 {offsets = [0, 0], sizes = [256, 64], strides = [1, 1]} : vector<256x128xf32> to vector<256x64xf32>
    %7 = math.tanh %6 : vector<256x64xf32>
    %8 = vector.extract_strided_slice %5 {offsets = [0, 64], sizes = [256, 64], strides = [1, 1]} : vector<256x128xf32> to vector<256x64xf32>
    %9 = arith.negf %8 : vector<256x64xf32>
    %10 = math.exp %9 : vector<256x64xf32>
    %cst_5 = arith.constant 1.000000e+00 : f32
    %11 = vector.broadcast %cst_5 : f32 to vector<256x64xf32>
    %12 = arith.addf %11, %10 : vector<256x64xf32>
    %13 = arith.divf %11, %12 : vector<256x64xf32>
    %14 = arith.mulf %7, %13 : vector<256x64xf32>
    %c0_6 = arith.constant 0 : index
    %c0_7 = arith.constant 0 : index
    %15 = vector.load %arg4[%c0_6, %c0_7] : memref<1x64xf32, #tpu.memory_space<vmem>>, vector<1x64xf32>
    %cst_8 = arith.constant dense<0.000000e+00> : vector<1x256xf32>
    %16 = tpu.matmul %15, %14, %cst_8 {dimension_numbers = #tpu.dot_dimension_numbers<[1], [1], [0], [0], [0, 0, 1, 0], [], []>} : vector<1x64xf32>, vector<256x64xf32>, vector<1x256xf32> -> vector<1x256xf32>
    %c0_9 = arith.constant 0 : index
    %c0_10 = arith.constant 0 : index
    %17 = vector.load %arg5[%c0_9, %c0_10] : memref<1x1xf32, #tpu.memory_space<vmem>>, vector<1x1xf32>
    %18 = vector.broadcast %17 : vector<1x1xf32> to vector<1x256xf32>
    %19 = arith.addf %16, %18 : vector<1x256xf32>
    %c0_11 = arith.constant 0 : index
    %c0_12 = arith.constant 0 : index
    %20 = vector.load %arg6[%c0_11, %c0_12] : memref<1x256xf32, #tpu.memory_space<vmem>>, vector<1x256xf32>
    tpu.vector_store %arg6[%c0_11, %c0_12], %19 {strides = array<i32>} : memref<1x256xf32, #tpu.memory_space<vmem>>, vector<1x256xf32>,
    return
  }
  func.func @transform_0(%arg0: i32) -> (i32, i32) {
    %c0_i32 = arith.constant 0 : i32
    %c0_i32_0 = arith.constant 0 : i32
    return %arg0, %c0_i32 : i32, i32
  }
  func.func @transform_1(%arg0: i32) -> (i32, i32) {
    %c0_i32 = arith.constant 0 : i32
    %c0_i32_0 = arith.constant 0 : i32
    %c0_i32_1 = arith.constant 0 : i32
    return %c0_i32, %c0_i32_0 : i32, i32
  }
  func.func @transform_2(%arg0: i32) -> (i32, i32) {
    %c0_i32 = arith.constant 0 : i32
    %c0_i32_0 = arith.constant 0 : i32
    %c0_i32_1 = arith.constant 0 : i32
    return %c0_i32, %c0_i32_0 : i32, i32
  }
  func.func @transform_3(%arg0: i32) -> (i32, i32) {
    %c0_i32 = arith.constant 0 : i32
    %c0_i32_0 = arith.constant 0 : i32
    %c0_i32_1 = arith.constant 0 : i32
    return %c0_i32, %c0_i32_0 : i32, i32
  }
  func.func @transform_4(%arg0: i32) -> (i32, i32) {
    %c0_i32 = arith.constant 0 : i32
    %c0_i32_0 = arith.constant 0 : i32
    %c0_i32_1 = arith.constant 0 : i32
    return %c0_i32, %c0_i32_0 : i32, i32
  }
  func.func @transform_5(%arg0: i32) -> (i32, i32) {
    %c0_i32 = arith.constant 0 : i32
    %c0_i32_0 = arith.constant 0 : i32
    return %c0_i32, %arg0 : i32, i32
  }
}

</mosaic_0001>

<llo_original>
// kernel: attn_net_gated_forward.1
$region0: #{attn_net_gated_forward.1}
  #allocation0 [shape = 'u32[]', space=smem, size = 0x4, offset = 0x4, fixed_abs, tag = 'smem constant byte address 0x4 - core index']
  #allocation1 [shape = 'u32[144,128]{1,0:T(1,128)}', space=vmem, size = 0x12000, scoped, tag = 'internal scratch']
  #allocation2 [shape = 'f32[1,1]{1,0:T(1,128)S(1)}', space=vmem, size = 0x200, scoped, tag = 'scoped memory for attn_net_gated_forward.1']
  %s0 = inlined_call_operand.vmem [shape: f32[512,128], index: 0, kind: input, shape index: {}]
  %s1 = inlined_call_operand.vmem [shape: f32[128,128], index: 1, kind: input, shape index: {}]
  %s2 = inlined_call_operand.vmem [shape: f32[1,128], index: 2, kind: input, shape index: {}]
  %s3 = inlined_call_operand.vmem [shape: f32[1,64], index: 3, kind: input, shape index: {}]
  %s4 = inlined_call_operand.<no memory space> [shape: f32[1,1], index: 4, kind: input, shape index: {}]
  %s5 = inlined_call_operand.vmem [shape: f32[1,512], index: 5, kind: output, shape index: {}]
  %s6 = sld [smem:[#allocation0]]
  $region53: #{attn_net_gated_forward.1} parent=0
    _
  %s8 = ssub.s32 1, %s6
  %s9 = scalar_select 0, %s8, %s6
  %v10 = vstv %s4
  %11 = vst [vmem:[#allocation2] sm:$0x1] %v10
  loop: start=0, step=1, limit=4
  $region2: #{attn_net_gated_forward.1} parent=0 // loop_pre_header
    _
  $region3: #{attn_net_gated_forward.1} parent=0 // loop_header
    %s13 = sphi 0, %s17
    %p14 = scmp.ge.s32.totalorder %s13, 4
    %s23 = sphi 0, %s25
    %s26 = sphi 0, %s23
    %s27 = sphi 0, %s26
    %s43 = sphi 0, %s27
    %s47 = sphi 0, %s47
    %s49 = sphi 0, %s47
    %s50 = sphi 0, %s49
    %s64 = sphi 0, %s50
    %s68 = sphi 0, %s68
    %s70 = sphi 0, %s68
    %s71 = sphi 0, %s70
    %s85 = sphi 0, %s71
    %s89 = sphi 0, %s89
    %s91 = sphi 0, %s89
    %s92 = sphi 0, %s91
    %s106 = sphi 0, %s92
    %s110 = sphi 0, %s110
    %s112 = sphi 0, %s110
    %s113 = sphi 0, %s112
    %s127 = sphi 0, %s113
    %s133 = sphi 0, %s135
    %s136 = sphi 0, %s133
    %s137 = sphi 0, %s136
    %s153 = sphi 0, %s137
  $region4: #{attn_net_gated_forward.1} parent=0 // loop_header_branch
    %16 = sbr.rel (%p14) target = $region8
  $region5: #{attn_net_gated_forward.1} parent=0 // loop_body
    %s18 = ssub.s32 %s13, 1
    %s19 = ssub.s32 %s13, 2
    %s20 = sadd.s32 %s13, 1
    %s21 = ssub.s32 %s13, %s20
    %p22 = scmp.eq.s32.totalorder %s21, 0
    %s24 = sadd.s32 %s23, 1
    %s25 = scalar_select %p22, %s23, %s24
    %p28 = pneg %p22
    %p29 = scmp.eq.s32.totalorder %s13, 1
    %p30 = por %p28, %p29
    %p31 = scmp.ne.s32.totalorder %s23, %s26
    %p32 = scmp.eq.s32.totalorder %s13, 0
    %p33 = por %p31, %p32
    %p34 = scmp.ne.s32.totalorder %s23, %s26
    %p35 = scmp.eq.s32.totalorder %s18, 1
    %p36 = por %p34, %p35
    %p37 = scmp.ne.s32.totalorder %s26, %s27
    %p38 = scmp.eq.s32.totalorder %s18, 0
    %p39 = por %p37, %p38
    %p40 = scmp.ne.s32.totalorder %s26, %s27
    %p41 = scmp.eq.s32.totalorder %s19, 1
    %p42 = por %p40, %p41
    %p44 = scmp.ne.s32.totalorder %s27, %s43
    %p45 = scmp.eq.s32.totalorder %s19, 0
    %p46 = por %p44, %p45
    %s48 = sadd.s32 %s47, 1
    %p51 = scmp.eq.s32.totalorder %s13, 1
    %p52 = scmp.ne.s32.totalorder %s47, %s49
    %p53 = scmp.eq.s32.totalorder %s13, 0
    %p54 = por %p52, %p53
    %p55 = scmp.ne.s32.totalorder %s47, %s49
    %p56 = scmp.eq.s32.totalorder %s18, 1
    %p57 = por %p55, %p56
    %p58 = scmp.ne.s32.totalorder %s49, %s50
    %p59 = scmp.eq.s32.totalorder %s18, 0
    %p60 = por %p58, %p59
    %p61 = scmp.ne.s32.totalorder %s49, %s50
    %p62 = scmp.eq.s32.totalorder %s19, 1
    %p63 = por %p61, %p62
    %p65 = scmp.ne.s32.totalorder %s50, %s64
    %p66 = scmp.eq.s32.totalorder %s19, 0
    %p67 = por %p65, %p66
    %s69 = sadd.s32 %s68, 1
    %p72 = scmp.eq.s32.totalorder %s13, 1
    %p73 = scmp.ne.s32.totalorder %s68, %s70
    %p74 = scmp.eq.s32.totalorder %s13, 0
    %p75 = por %p73, %p74
    %p76 = scmp.ne.s32.totalorder %s68, %s70
    %p77 = scmp.eq.s32.totalorder %s18, 1
    %p78 = por %p76, %p77
    %p79 = scmp.ne.s32.totalorder %s70, %s71
    %p80 = scmp.eq.s32.totalorder %s18, 0
    %p81 = por %p79, %p80
    %p82 = scmp.ne.s32.totalorder %s70, %s71
    %p83 = scmp.eq.s32.totalorder %s19, 1
    %p84 = por %p82, %p83
    %p86 = scmp.ne.s32.totalorder %s71, %s85
    %p87 = scmp.eq.s32.totalorder %s19, 0
    %p88 = por %p86, %p87
    %s90 = sadd.s32 %s89, 1
    %p93 = scmp.eq.s32.totalorder %s13, 1
    %p94 = scmp.ne.s32.totalorder %s89, %s91
    %p95 = scmp.eq.s32.totalorder %s13, 0
    %p96 = por %p94, %p95
    %p97 = scmp.ne.s32.totalorder %s89, %s91
    %p98 = scmp.eq.s32.totalorder %s18, 1
    %p99 = por %p97, %p98
    %p100 = scmp.ne.s32.totalorder %s91, %s92
    %p101 = scmp.eq.s32.totalorder %s18, 0
    %p102 = por %p100, %p101
    %p103 = scmp.ne.s32.totalorder %s91, %s92
    %p104 = scmp.eq.s32.totalorder %s19, 1
    %p105 = por %p103, %p104
    %p107 = scmp.ne.s32.totalorder %s92, %s106
    %p108 = scmp.eq.s32.totalorder %s19, 0
    %p109 = por %p107, %p108
    %s111 = sadd.s32 %s110, 1
    %p114 = scmp.eq.s32.totalorder %s13, 1
    %p115 = scmp.ne.s32.totalorder %s110, %s112
    %p116 = scmp.eq.s32.totalorder %s13, 0
    %p117 = por %p115, %p116
    %p118 = scmp.ne.s32.totalorder %s110, %s112
    %p119 = scmp.eq.s32.totalorder %s18, 1
    %p120 = por %p118, %p119
    %p121 = scmp.ne.s32.totalorder %s112, %s113
    %p122 = scmp.eq.s32.totalorder %s18, 0
    %p123 = por %p121, %p122
    %p124 = scmp.ne.s32.totalorder %s112, %s113
    %p125 = scmp.eq.s32.totalorder %s19, 1
    %p126 = por %p124, %p125
    %p128 = scmp.ne.s32.totalorder %s113, %s127
    %p129 = scmp.eq.s32.totalorder %s19, 0
    %p130 = por %p128, %p129
    %s131 = ssub.s32 %s13, %s20
    %p132 = scmp.eq.s32.totalorder %s131, 0
    %s134 = sadd.s32 %s133, 1
    %s135 = scalar_select %p132, %s133, %s134
    %p138 = pneg %p132
    %p139 = scmp.eq.s32.totalorder %s13, 1
    %p140 = por %p138, %p139
    %p141 = scmp.ne.s32.totalorder %s133, %s136
    %p142 = scmp.eq.s32.totalorder %s13, 0
    %p143 = por %p141, %p142
    %p144 = scmp.ne.s32.totalorder %s133, %s136
    %p145 = scmp.eq.s32.totalorder %s18, 1
    %p146 = por %p144, %p145
    %p147 = scmp.ne.s32.totalorder %s136, %s137
    %p148 = scmp.eq.s32.totalorder %s18, 0
    %p149 = por %p147, %p148
    %p150 = scmp.ne.s32.totalorder %s136, %s137
    %p151 = scmp.eq.s32.totalorder %s19, 1
    %p152 = por %p150, %p151
    %p154 = scmp.ne.s32.totalorder %s137, %s153
    %p155 = scmp.eq.s32.totalorder %s19, 0
    %p156 = por %p154, %p155
    %p157 = scmp.le.s32.totalorder 1, %s13
    %p158 = scmp.lt.s32.totalorder %s13, 3
    %p159 = pnand %p157, %p158
    %p160 = pneg %p159
    // Predicated region
    $region9: #{attn_net_gated_forward.1} parent=5 // pred_check
      _
    $region10: #{attn_net_gated_forward.1} parent=5 // pred_check_branch
      %162 = sbr.rel (%p159) target = $region12
    $region11: #{attn_net_gated_forward.1} parent=5 // pred_region
      %s163 = ssub.s32 %s13, 1
      // Predicated region
      $region13: #{attn_net_gated_forward.1} parent=11 // pred_check
        %p164 = pneg %p60
      $region14: #{attn_net_gated_forward.1} parent=11 // pred_check_branch
        %166 = sbr.rel (%p164) target = $region16
      $region15: #{attn_net_gated_forward.1} parent=11 // pred_region
        _
      $region16: #{attn_net_gated_forward.1} parent=11 // pred_fallthru
        _
      // Predicated region
      $region17: #{attn_net_gated_forward.1} parent=11 // pred_check
        %p167 = pneg %p81
      $region18: #{attn_net_gated_forward.1} parent=11 // pred_check_branch
        %169 = sbr.rel (%p167) target = $region20
      $region19: #{attn_net_gated_forward.1} parent=11 // pred_region
        _
      $region20: #{attn_net_gated_forward.1} parent=11 // pred_fallthru
        _
      // Predicated region
      $region21: #{attn_net_gated_forward.1} parent=11 // pred_check
        %p170 = pneg %p102
      $region22: #{attn_net_gated_forward.1} parent=11 // pred_check_branch
        %172 = sbr.rel (%p170) target = $region24
      $region23: #{attn_net_gated_forward.1} parent=11 // pred_region
        _
      $region24: #{attn_net_gated_forward.1} parent=11 // pred_fallthru
        _
      // Predicated region
      $region25: #{attn_net_gated_forward.1} parent=11 // pred_check
        %p173 = pneg %p123
      $region26: #{attn_net_gated_forward.1} parent=11 // pred_check_branch
        %175 = sbr.rel (%p173) target = $region28
      $region27: #{attn_net_gated_forward.1} parent=11 // pred_region
        _
      $region28: #{attn_net_gated_forward.1} parent=11 // pred_fallthru
        _
    $region12: #{attn_net_gated_forward.1} parent=5 // pred_fallthru
      _
    %p176 = scmp.lt.s32.totalorder %s13, 2
    // Predicated region
    $region29: #{attn_net_gated_forward.1} parent=5 // pred_check
      %p177 = pneg %p176
    $region30: #{attn_net_gated_forward.1} parent=5 // pred_check_branch
      %179 = sbr.rel (%p177) target = $region32
    $region31: #{attn_net_gated_forward.1} parent=5 // pred_region
      // Predicated region
      $region33: #{attn_net_gated_forward.1} parent=31 // pred_check
        %p180 = pneg %p33
      $region34: #{attn_net_gated_forward.1} parent=31 // pred_check_branch
        %182 = sbr.rel (%p180) target = $region36
      $region35: #{attn_net_gated_forward.1} parent=31 // pred_region
        %s183 = smul.u32 32, %s13
        %p184 = scmp.lt.s32.totalorder %s183, 63
        %s185 = scalar_select %p184, %s183, 63
        %s186 = smul.addr %s185, 8
        %s187 = scalar_lea.vmem %s0, %s186
        %s188 = smul.u32 32, %s13
      $region36: #{attn_net_gated_forward.1} parent=31 // pred_fallthru
        _
    $region32: #{attn_net_gated_forward.1} parent=5 // pred_fallthru
      _
    %p189 = scmp.le.s32.totalorder 1, %s13
    %p190 = scmp.lt.s32.totalorder %s13, 3
    %p191 = pnand %p189, %p190
    %p192 = pneg %p191
    // Predicated region
    $region37: #{attn_net_gated_forward.1} parent=5 // pred_check
      _
    $region38: #{attn_net_gated_forward.1} parent=5 // pred_check_branch
      %194 = sbr.rel (%p191) target = $region40
    $region39: #{attn_net_gated_forward.1} parent=5 // pred_region
      %s195 = ssub.s32 %s13, 1
      %s196 = smul.u32 32, %s18
      %p197 = scmp.lt.s32.totalorder %s196, 63
      %s198 = scalar_select %p197, %s196, 63
      %s199 = smul.addr %s198, 8
      %s200 = scalar_lea.vmem %s0, %s199
      %p201 = pneg %p39
      %p202 = pneg %p36
      %p203 = pneg %p60
      %p204 = pneg %p57
      %p205 = pneg %p81
      %p206 = pneg %p78
      %p207 = pneg %p102
      %p208 = pneg %p99
      %p209 = pneg %p123
      %p210 = pneg %p120
      %p211 = pneg %p149
      %p212 = pneg %p146
      %s213 = smul.u32 2, %s18
      %p214 = scmp.lt.s32.totalorder %s213, 3
      %s215 = scalar_select %p214, %s213, 3
      %s216 = scalar_lea.vmem %s5, %s215
      %s217 = smul.u32 32, %s18
      %p218 = scmp.lt.s32.totalorder %s217, 63
      %s219 = scalar_select %p218, %s217, 63
      %s220 = smul.addr %s219, 8
      %s221 = scalar_lea.vmem %s0, %s220
      %s222 = smul.u32 32, %s18
      %s223 = smul.u32 2, %s18
      %p224 = scmp.lt.s32.totalorder %s223, 3
      %s225 = scalar_select %p224, %s223, 3
      %s226 = scalar_lea.vmem %s5, %s225
      %s227 = smul.u32 2, %s18
      %v228 = vld [vmem:[%s221] sm:$0xff]
      %v229 = vld [vmem:[%s221 + $0x8] sm:$0xff]
      %v230 = vld [vmem:[%s221 + $0x10] sm:$0xff]
      %v231 = vld [vmem:[%s221 + $0x18] sm:$0xff]
      %v232 = vld [vmem:[%s221 + $0x20] sm:$0xff]
      %v233 = vld [vmem:[%s221 + $0x28] sm:$0xff]
      %v234 = vld [vmem:[%s221 + $0x30] sm:$0xff]
      %v235 = vld [vmem:[%s221 + $0x38] sm:$0xff]
      %v236 = vld [vmem:[%s221 + $0x40] sm:$0xff]
      %v237 = vld [vmem:[%s221 + $0x48] sm:$0xff]
      %v238 = vld [vmem:[%s221 + $0x50] sm:$0xff]
      %v239 = vld [vmem:[%s221 + $0x58] sm:$0xff]
      %v240 = vld [vmem:[%s221 + $0x60] sm:$0xff]
      %v241 = vld [vmem:[%s221 + $0x68] sm:$0xff]
      %v242 = vld [vmem:[%s221 + $0x70] sm:$0xff]
      %v243 = vld [vmem:[%s221 + $0x78] sm:$0xff]
      %v244 = vld [vmem:[%s221 + $0x80] sm:$0xff]
      %v245 = vld [vmem:[%s221 + $0x88] sm:$0xff]
      %v246 = vld [vmem:[%s221 + $0x90] sm:$0xff]
      %v247 = vld [vmem:[%s221 + $0x98] sm:$0xff]
      %v248 = vld [vmem:[%s221 + $0xa0] sm:$0xff]
      %v249 = vld [vmem:[%s221 + $0xa8] sm:$0xff]
      %v250 = vld [vmem:[%s221 + $0xb0] sm:$0xff]
      %v251 = vld [vmem:[%s221 + $0xb8] sm:$0xff]
      %v252 = vld [vmem:[%s221 + $0xc0] sm:$0xff]
      %v253 = vld [vmem:[%s221 + $0xc8] sm:$0xff]
      %v254 = vld [vmem:[%s221 + $0xd0] sm:$0xff]
      %v255 = vld [vmem:[%s221 + $0xd8] sm:$0xff]
      %v256 = vld [vmem:[%s221 + $0xe0] sm:$0xff]
      %v257 = vld [vmem:[%s221 + $0xe8] sm:$0xff]
      %v258 = vld [vmem:[%s221 + $0xf0] sm:$0xff]
      %v259 = vld [vmem:[%s221 + $0xf8] sm:$0xff]
      %v260 = vld [vmem:[%s1] sm:$0xff]
      %v261 = vld [vmem:[%s1 + $0x8] sm:$0xff]
      %v262 = vld [vmem:[%s1 + $0x10] sm:$0xff]
      %v263 = vld [vmem:[%s1 + $0x18] sm:$0xff]
      %v264 = vld [vmem:[%s1 + $0x20] sm:$0xff]
      %v265 = vld [vmem:[%s1 + $0x28] sm:$0xff]
      %v266 = vld [vmem:[%s1 + $0x30] sm:$0xff]
      %v267 = vld [vmem:[%s1 + $0x38] sm:$0xff]
      %v268 = vld [vmem:[%s1 + $0x40] sm:$0xff]
      %v269 = vld [vmem:[%s1 + $0x48] sm:$0xff]
      %v270 = vld [vmem:[%s1 + $0x50] sm:$0xff]
      %v271 = vld [vmem:[%s1 + $0x58] sm:$0xff]
      %v272 = vld [vmem:[%s1 + $0x60] sm:$0xff]
      %v273 = vld [vmem:[%s1 + $0x68] sm:$0xff]
      %v274 = vld [vmem:[%s1 + $0x70] sm:$0xff]
      %v275 = vld [vmem:[%s1 + $0x78] sm:$0xff]
      %v276 = vld [vmem:[%s2] sm:$0x1]
      %v278 = vlaneseq
      %v279 = vshrl.u32 %v278, 7
      %v280 = vsub.s32 0, %v279
      %v281 = vrot.slane %v276, %v280
      %283 = vmatprep.subr.mxu0 0.0
      %284 = vmatpush1.msra.mxu0 %v260
      %285 = vmatprep.subr.mxu0 0.0
      %286 = vmatpush1.msra.mxu0 %v261
      %287 = vmatprep.subr.mxu0 0.0
      %288 = vmatpush1.msra.mxu0 %v262
      %289 = vmatprep.subr.mxu0 0.0
      %290 = vmatpush1.msra.mxu0 %v263
      %291 = vmatprep.subr.mxu0 0.0
      %292 = vmatpush1.msra.mxu0 %v264
      %293 = vmatprep.subr.mxu0 0.0
      %294 = vmatpush1.msra.mxu0 %v265
      %295 = vmatprep.subr.mxu0 0.0
      %296 = vmatpush1.msra.mxu0 %v266
      %297 = vmatprep.subr.mxu0 0.0
      %298 = vmatpush1.msra.mxu0 %v267
      %299 = vmatprep.subr.mxu0 0.0
      %300 = vmatpush1.msra.mxu0 %v268
      %301 = vmatprep.subr.mxu0 0.0
      %302 = vmatpush1.msra.mxu0 %v269
      %303 = vmatprep.subr.mxu0 0.0
      %304 = vmatpush1.msra.mxu0 %v270
      %305 = vmatprep.subr.mxu0 0.0
      %306 = vmatpush1.msra.mxu0 %v271
      %307 = vmatprep.subr.mxu0 0.0
      %308 = vmatpush1.msra.mxu0 %v272
      %309 = vmatprep.subr.mxu0 0.0
      %310 = vmatpush1.msra.mxu0 %v273
      %311 = vmatprep.subr.mxu0 0.0
      %312 = vmatpush1.msra.mxu0 %v274
      %313 = vmatprep.subr.mxu0 0.0
      %314 = vmatpush1.msra.mxu0 %v275
      %315 = vmatprep.subr.mxu0 0.0
      %316 = vmatpush1.msra.mxu0 0.0
      %317 = vmatprep.subr.mxu0 0.0
      %318 = vmatpush1.msra.mxu0 0.0
      %319 = vmatprep.subr.mxu0 0.0
      %320 = vmatpush1.msra.mxu0 0.0
      %321 = vmatprep.subr.mxu0 0.0
      %322 = vmatpush1.msra.mxu0 0.0
      %323 = vmatprep.subr.mxu0 0.0
      %324 = vmatpush1.msra.mxu0 0.0
      %325 = vmatprep.subr.mxu0 0.0
      %326 = vmatpush1.msra.mxu0 0.0
      %327 = vmatprep.subr.mxu0 0.0
      %328 = vmatpush1.msra.mxu0 0.0
      %329 = vmatprep.subr.mxu0 0.0
      %330 = vmatpush1.msra.mxu0 0.0
      %331 = vmatprep.subr.mxu0 0.0
      %332 = vmatpush1.msra.mxu0 0.0
      %333 = vmatprep.subr.mxu0 0.0
      %334 = vmatpush1.msra.mxu0 0.0
      %335 = vmatprep.subr.mxu0 0.0
      %336 = vmatpush1.msra.mxu0 0.0
      %337 = vmatprep.subr.mxu0 0.0
      %338 = vmatpush1.msra.mxu0 0.0
      %339 = vmatprep.subr.mxu0 0.0
      %340 = vmatpush1.msra.mxu0 0.0
      %341 = vmatprep.subr.mxu0 0.0
      %342 = vmatpush1.msra.mxu0 0.0
      %343 = vmatprep.subr.mxu0 0.0
      %344 = vmatpush1.msra.mxu0 0.0
      %345 = vmatprep.subr.mxu0 0.0
      %346 = vmatpush1.msra.mxu0 0.0
      %347 = vmatprep.mubr.f32.mxu0 0.0
      %348 = vmatmul.mubr.f32.gmra.mrb[0].mxu0 %v228
      %v349 = vpop.f32.mrb[0].mxu0
      %v350 = vadd.f32 %v281, %v349
      %v351 = vpop.f32.mrb[0].mxu0
      %352 = vmatprep.mubr.f32.mxu0 0.0
      %353 = vmatmul.mubr.f32.gmra.mrb[0].mxu0 %v229
      %v354 = vpop.f32.mrb[0].mxu0
      %v355 = vadd.f32 %v281, %v354
      %v356 = vpop.f32.mrb[0].mxu0
      %357 = vmatprep.mubr.f32.mxu0 0.0
      %358 = vmatmul.mubr.f32.gmra.mrb[0].mxu0 %v230
      %v359 = vpop.f32.mrb[0].mxu0
      %v360 = vadd.f32 %v281, %v359
      %v361 = vpop.f32.mrb[0].mxu0
      %362 = vmatprep.mubr.f32.mxu0 0.0
      %363 = vmatmul.mubr.f32.gmra.mrb[0].mxu0 %v231
      %v364 = vpop.f32.mrb[0].mxu0
      %v365 = vadd.f32 %v281, %v364
      %v366 = vpop.f32.mrb[0].mxu0
      %367 = vmatprep.mubr.f32.mxu0 0.0
      %368 = vmatmul.mubr.f32.gmra.mrb[0].mxu0 %v232
      %v369 = vpop.f32.mrb[0].mxu0
      %v370 = vadd.f32 %v281, %v369
      %v371 = vpop.f32.mrb[0].mxu0
      %372 = vmatprep.mubr.f32.mxu0 0.0
      %373 = vmatmul.mubr.f32.gmra.mrb[0].mxu0 %v233
      %v374 = vpop.f32.mrb[0].mxu0
      %v375 = vadd.f32 %v281, %v374
      %v376 = vpop.f32.mrb[0].mxu0
      %377 = vmatprep.mubr.f32.mxu0 0.0
      %378 = vmatmul.mubr.f32.gmra.mrb[0].mxu0 %v234
      %v379 = vpop.f32.mrb[0].mxu0
      %v380 = vadd.f32 %v281, %v379
      %v381 = vpop.f32.mrb[0].mxu0
      %382 = vmatprep.mubr.f32.mxu0 0.0
      %383 = vmatmul.mubr.f32.gmra.mrb[0].mxu0 %v235
      %v384 = vpop.f32.mrb[0].mxu0
      %v385 = vadd.f32 %v281, %v384
      %v386 = vpop.f32.mrb[0].mxu0
      %387 = vmatprep.mubr.f32.mxu0 0.0
      %388 = vmatmul.mubr.f32.gmra.mrb[0].mxu0 %v236
      %v389 = vpop.f32.mrb[0].mxu0
      %v390 = vadd.f32 %v281, %v389
      %v391 = vpop.f32.mrb[0].mxu0
      %392 = vmatprep.mubr.f32.mxu0 0.0
      %393 = vmatmul.mubr.f32.gmra.mrb[0].mxu0 %v237
      %v394 = vpop.f32.mrb[0].mxu0
      %v395 = vadd.f32 %v281, %v394
      %v396 = vpop.f32.mrb[0].mxu0
      %397 = vmatprep.mubr.f32.mxu0 0.0
      %398 = vmatmul.mubr.f32.gmra.mrb[0].mxu0 %v238
      %v399 = vpop.f32.mrb[0].mxu0
      %v400 = vadd.f32 %v281, %v399
      %v401 = vpop.f32.mrb[0].mxu0
      %402 = vmatprep.mubr.f32.mxu0 0.0
      %403 = vmatmul.mubr.f32.gmra.mrb[0].mxu0 %v239
      %v404 = vpop.f32.mrb[0].mxu0
      %v405 = vadd.f32 %v281, %v404
      %v406 = vpop.f32.mrb[0].mxu0
      %407 = vmatprep.mubr.f32.mxu0 0.0
      %408 = vmatmul.mubr.f32.gmra.mrb[0].mxu0 %v240
      %v409 = vpop.f32.mrb[0].mxu0
      %v410 = vadd.f32 %v281, %v409
      %v411 = vpop.f32.mrb[0].mxu0
      %412 = vmatprep.mubr.f32.mxu0 0.0
      %413 = vmatmul.mubr.f32.gmra.mrb[0].mxu0 %v241
      %v414 = vpop.f32.mrb[0].mxu0
      %v415 = vadd.f32 %v281, %v414
      %v416 = vpop.f32.mrb[0].mxu0
      %417 = vmatprep.mubr.f32.mxu0 0.0
      %418 = vmatmul.mubr.f32.gmra.mrb[0].mxu0 %v242
      %v419 = vpop.f32.mrb[0].mxu0
      %v420 = vadd.f32 %v281, %v419
      %v421 = vpop.f32.mrb[0].mxu0
      %422 = vmatprep.mubr.f32.mxu0 0.0
      %423 = vmatmul.mubr.f32.gmra.mrb[0].mxu0 %v243
      %v424 = vpop.f32.mrb[0].mxu0
      %v425 = vadd.f32 %v281, %v424
      %v426 = vpop.f32.mrb[0].mxu0
      %427 = vmatprep.mubr.f32.mxu0 0.0
      %428 = vmatmul.mubr.f32.gmra.mrb[0].mxu0 %v244
      %v429 = vpop.f32.mrb[0].mxu0
      %v430 = vadd.f32 %v281, %v429
      %v431 = vpop.f32.mrb[0].mxu0
      %432 = vmatprep.mubr.f32.mxu0 0.0
      %433 = vmatmul.mubr.f32.gmra.mrb[0].mxu0 %v245
      %v434 = vpop.f32.mrb[0].mxu0
      %v435 = vadd.f32 %v281, %v434
      %v436 = vpop.f32.mrb[0].mxu0
      %437 = vmatprep.mubr.f32.mxu0 0.0
      %438 = vmatmul.mubr.f32.gmra.mrb[0].mxu0 %v246
      %v439 = vpop.f32.mrb[0].mxu0
      %v440 = vadd.f32 %v281, %v439
      %v441 = vpop.f32.mrb[0].mxu0
      %442 = vmatprep.mubr.f32.mxu0 0.0
      %443 = vmatmul.mubr.f32.gmra.mrb[0].mxu0 %v247
      %v444 = vpop.f32.mrb[0].mxu0
      %v445 = vadd.f32 %v281, %v444
      %v446 = vpop.f32.mrb[0].mxu0
      %447 = vmatprep.mubr.f32.mxu0 0.0
      %448 = vmatmul.mubr.f32.gmra.mrb[0].mxu0 %v248
      %v449 = vpop.f32.mrb[0].mxu0
      %v450 = vadd.f32 %v281, %v449
      %v451 = vpop.f32.mrb[0].mxu0
      %452 = vmatprep.mubr.f32.mxu0 0.0
      %453 = vmatmul.mubr.f32.gmra.mrb[0].mxu0 %v249
      %v454 = vpop.f32.mrb[0].mxu0
      %v455 = vadd.f32 %v281, %v454
      %v456 = vpop.f32.mrb[0].mxu0
      %457 = vmatprep.mubr.f32.mxu0 0.0
      %458 = vmatmul.mubr.f32.gmra.mrb[0].mxu0 %v250
      %v459 = vpop.f32.mrb[0].mxu0
      %v460 = vadd.f32 %v281, %v459
      %v461 = vpop.f32.mrb[0].mxu0
      %462 = vmatprep.mubr.f32.mxu0 0.0
      %463 = vmatmul.mubr.f32.gmra.mrb[0].mxu0 %v251
      %v464 = vpop.f32.mrb[0].mxu0
      %v465 = vadd.f32 %v281, %v464
      %v466 = vpop.f32.mrb[0].mxu0
      %467 = vmatprep.mubr.f32.mxu0 0.0
      %468 = vmatmul.mubr.f32.gmra.mrb[0].mxu0 %v252
      %v469 = vpop.f32.mrb[0].mxu0
      %v470 = vadd.f32 %v281, %v469
      %v471 = vpop.f32.mrb[0].mxu0
      %472 = vmatprep.mubr.f32.mxu0 0.0
      %473 = vmatmul.mubr.f32.gmra.mrb[0].mxu0 %v253
      %v474 = vpop.f32.mrb[0].mxu0
      %v475 = vadd.f32 %v281, %v474
      %v476 = vpop.f32.mrb[0].mxu0
      %477 = vmatprep.mubr.f32.mxu0 0.0
      %478 = vmatmul.mubr.f32.gmra.mrb[0].mxu0 %v254
      %v479 = vpop.f32.mrb[0].mxu0
      %v480 = vadd.f32 %v281, %v479
      %v481 = vpop.f32.mrb[0].mxu0
      %482 = vmatprep.mubr.f32.mxu0 0.0
      %483 = vmatmul.mubr.f32.gmra.mrb[0].mxu0 %v255
      %v484 = vpop.f32.mrb[0].mxu0
      %v485 = vadd.f32 %v281, %v484
      %v486 = vpop.f32.mrb[0].mxu0
      %487 = vmatprep.mubr.f32.mxu0 0.0
      %488 = vmatmul.mubr.f32.gmra.mrb[0].mxu0 %v256
      %v489 = vpop.f32.mrb[0].mxu0
      %v490 = vadd.f32 %v281, %v489
      %v491 = vpop.f32.mrb[0].mxu0
      %492 = vmatprep.mubr.f32.mxu0 0.0
      %493 = vmatmul.mubr.f32.gmra.mrb[0].mxu0 %v257
      %v494 = vpop.f32.mrb[0].mxu0
      %v495 = vadd.f32 %v281, %v494
      %v496 = vpop.f32.mrb[0].mxu0
      %497 = vmatprep.mubr.f32.mxu0 0.0
      %498 = vmatmul.mubr.f32.gmra.mrb[0].mxu0 %v258
      %v499 = vpop.f32.mrb[0].mxu0
      %v500 = vadd.f32 %v281, %v499
      %v501 = vpop.f32.mrb[0].mxu0
      %502 = vmatprep.mubr.f32.mxu0 0.0
      %503 = vmatmul.mubr.f32.gmra.mrb[0].mxu0 %v259
      %v504 = vpop.f32.mrb[0].mxu0
      %v505 = vadd.f32 %v281, %v504
      %v506 = vpop.f32.mrb[0].mxu0
      %507 = vdwg.mxu0
      %v508 = vtanh.pop %v350
      %v509 = vtanh.pop %v355
      %v510 = vtanh.pop %v360
      %v511 = vtanh.pop %v365
      %v512 = vtanh.pop %v370
      %v513 = vtanh.pop %v375
      %v514 = vtanh.pop %v380
      %v515 = vtanh.pop %v385
      %v516 = vtanh.pop %v390
      %v517 = vtanh.pop %v395
      %v518 = vtanh.pop %v400
      %v519 = vtanh.pop %v405
      %v520 = vtanh.pop %v410
      %v521 = vtanh.pop %v415
      %v522 = vtanh.pop %v420
      %v523 = vtanh.pop %v425
      %v524 = vtanh.pop %v430
      %v525 = vtanh.pop %v435
      %v526 = vtanh.pop %v440
      %v527 = vtanh.pop %v445
      %v528 = vtanh.pop %v450
      %v529 = vtanh.pop %v455
      %v530 = vtanh.pop %v460
      %v531 = vtanh.pop %v465
      %v532 = vtanh.pop %v470
      %v533 = vtanh.pop %v475
      %v534 = vtanh.pop %v480
      %v535 = vtanh.pop %v485
      %v536 = vtanh.pop %v490
      %v537 = vtanh.pop %v495
      %v538 = vtanh.pop %v500
      %v539 = vtanh.pop %v505
      %v540 = vxor.u32 %v350, 2147483648
      %v541 = vxor.u32 %v355, 2147483648
      %v542 = vxor.u32 %v360, 2147483648
      %v543 = vxor.u32 %v365, 2147483648
      %v544 = vxor.u32 %v370, 2147483648
      %v545 = vxor.u32 %v375, 2147483648
      %v546 = vxor.u32 %v380, 2147483648
      %v547 = vxor.u32 %v385, 2147483648
      %v548 = vxor.u32 %v390, 2147483648
      %v549 = vxor.u32 %v395, 2147483648
      %v550 = vxor.u32 %v400, 2147483648
      %v551 = vxor.u32 %v405, 2147483648
      %v552 = vxor.u32 %v410, 2147483648
      %v553 = vxor.u32 %v415, 2147483648
      %v554 = vxor.u32 %v420, 2147483648
      %v555 = vxor.u32 %v425, 2147483648
      %v556 = vxor.u32 %v430, 2147483648
      %v557 = vxor.u32 %v435, 2147483648
      %v558 = vxor.u32 %v440, 2147483648
      %v559 = vxor.u32 %v445, 2147483648
      %v560 = vxor.u32 %v450, 2147483648
      %v561 = vxor.u32 %v455, 2147483648
      %v562 = vxor.u32 %v460, 2147483648
      %v563 = vxor.u32 %v465, 2147483648
      %v564 = vxor.u32 %v470, 2147483648
      %v565 = vxor.u32 %v475, 2147483648
      %v566 = vxor.u32 %v480, 2147483648
      %v567 = vxor.u32 %v485, 2147483648
      %v568 = vxor.u32 %v490, 2147483648
      %v569 = vxor.u32 %v495, 2147483648
      %v570 = vxor.u32 %v500, 2147483648
      %v571 = vxor.u32 %v505, 2147483648
      %v572 = vmul.f32 %v540, 1.442695
      %v573 = vpow.pop %v572
      %v574 = vmul.f32 %v541, 1.442695
      %v575 = vpow.pop %v574
      %v576 = vmul.f32 %v542, 1.442695
      %v577 = vpow.pop %v576
      %v578 = vmul.f32 %v543, 1.442695
      %v579 = vpow.pop %v578
      %v580 = vmul.f32 %v544, 1.442695
      %v581 = vpow.pop %v580
      %v582 = vmul.f32 %v545, 1.442695
      %v583 = vpow.pop %v582
      %v584 = vmul.f32 %v546, 1.442695
      %v585 = vpow.pop %v584
      %v586 = vmul.f32 %v547, 1.442695
      %v587 = vpow.pop %v586
      %v588 = vmul.f32 %v548, 1.442695
      %v589 = vpow.pop %v588
      %v590 = vmul.f32 %v549, 1.442695
      %v591 = vpow.pop %v590
      %v592 = vmul.f32 %v550, 1.442695
      %v593 = vpow.pop %v592
      %v594 = vmul.f32 %v551, 1.442695
      %v595 = vpow.pop %v594
      %v596 = vmul.f32 %v552, 1.442695
      %v597 = vpow.pop %v596
      %v598 = vmul.f32 %v553, 1.442695
      %v599 = vpow.pop %v598
      %v600 = vmul.f32 %v554, 1.442695
      %v601 = vpow.pop %v600
      %v602 = vmul.f32 %v555, 1.442695
      %v603 = vpow.pop %v602
      %v604 = vmul.f32 %v556, 1.442695
      %v605 = vpow.pop %v604
      %v606 = vmul.f32 %v557, 1.442695
      %v607 = vpow.pop %v606
      %v608 = vmul.f32 %v558, 1.442695
      %v609 = vpow.pop %v608
      %v610 = vmul.f32 %v559, 1.442695
      %v611 = vpow.pop %v610
      %v612 = vmul.f32 %v560, 1.442695
      %v613 = vpow.pop %v612
      %v614 = vmul.f32 %v561, 1.442695
      %v615 = vpow.pop %v614
      %v616 = vmul.f32 %v562, 1.442695
      %v617 = vpow.pop %v616
      %v618 = vmul.f32 %v563, 1.442695
      %v619 = vpow.pop %v618
      %v620 = vmul.f32 %v564, 1.442695
      %v621 = vpow.pop %v620
      %v622 = vmul.f32 %v565, 1.442695
      %v623 = vpow.pop %v622
      %v624 = vmul.f32 %v566, 1.442695
      %v625 = vpow.pop %v624
      %v626 = vmul.f32 %v567, 1.442695
      %v627 = vpow.pop %v626
      %v628 = vmul.f32 %v568, 1.442695
      %v629 = vpow.pop %v628
      %v630 = vmul.f32 %v569, 1.442695
      %v631 = vpow.pop %v630
      %v632 = vmul.f32 %v570, 1.442695
      %v633 = vpow.pop %v632
      %v634 = vmul.f32 %v571, 1.442695
      %v635 = vpow.pop %v634
      %v636 = vadd.f32 %v573, 1.0
      %v637 = vadd.f32 %v575, 1.0
      %v638 = vadd.f32 %v577, 1.0
      %v639 = vadd.f32 %v579, 1.0
      %v640 = vadd.f32 %v581, 1.0
      %v641 = vadd.f32 %v583, 1.0
      %v642 = vadd.f32 %v585, 1.0
      %v643 = vadd.f32 %v587, 1.0
      %v644 = vadd.f32 %v589, 1.0
      %v645 = vadd.f32 %v591, 1.0
      %v646 = vadd.f32 %v593, 1.0
      %v647 = vadd.f32 %v595, 1.0
      %v648 = vadd.f32 %v597, 1.0
      %v649 = vadd.f32 %v599, 1.0
      %v650 = vadd.f32 %v601, 1.0
      %v651 = vadd.f32 %v603, 1.0
      %v652 = vadd.f32 %v605, 1.0
      %v653 = vadd.f32 %v607, 1.0
      %v654 = vadd.f32 %v609, 1.0
      %v655 = vadd.f32 %v611, 1.0
      %v656 = vadd.f32 %v613, 1.0
      %v657 = vadd.f32 %v615, 1.0
      %v658 = vadd.f32 %v617, 1.0
      %v659 = vadd.f32 %v619, 1.0
      %v660 = vadd.f32 %v621, 1.0
      %v661 = vadd.f32 %v623, 1.0
      %v662 = vadd.f32 %v625, 1.0
      %v663 = vadd.f32 %v627, 1.0
      %v664 = vadd.f32 %v629, 1.0
      %v665 = vadd.f32 %v631, 1.0
      %v666 = vadd.f32 %v633, 1.0
      %v667 = vadd.f32 %v635, 1.0
      %v668 = vrcp.pop %v636
      %v669 = vmul.f32 1.0, %v668
      %v670 = vrcp.pop %v637
      %v671 = vmul.f32 1.0, %v670
      %v672 = vrcp.pop %v638
      %v673 = vmul.f32 1.0, %v672
      %v674 = vrcp.pop %v639
      %v675 = vmul.f32 1.0, %v674
      %v676 = vrcp.pop %v640
      %v677 = vmul.f32 1.0, %v676
      %v678 = vrcp.pop %v641
      %v679 = vmul.f32 1.0, %v678
      %v680 = vrcp.pop %v642
      %v681 = vmul.f32 1.0, %v680
      %v682 = vrcp.pop %v643
      %v683 = vmul.f32 1.0, %v682
      %v684 = vrcp.pop %v644
      %v685 = vmul.f32 1.0, %v684
      %v686 = vrcp.pop %v645
      %v687 = vmul.f32 1.0, %v686
      %v688 = vrcp.pop %v646
      %v689 = vmul.f32 1.0, %v688
      %v690 = vrcp.pop %v647
      %v691 = vmul.f32 1.0, %v690
      %v692 = vrcp.pop %v648
      %v693 = vmul.f32 1.0, %v692
      %v694 = vrcp.pop %v649
      %v695 = vmul.f32 1.0, %v694
      %v696 = vrcp.pop %v650
      %v697 = vmul.f32 1.0, %v696
      %v698 = vrcp.pop %v651
      %v699 = vmul.f32 1.0, %v698
      %v700 = vrcp.pop %v652
      %v701 = vmul.f32 1.0, %v700
      %v702 = vrcp.pop %v653
      %v703 = vmul.f32 1.0, %v702
      %v704 = vrcp.pop %v654
      %v705 = vmul.f32 1.0, %v704
      %v706 = vrcp.pop %v655
      %v707 = vmul.f32 1.0, %v706
      %v708 = vrcp.pop %v656
      %v709 = vmul.f32 1.0, %v708
      %v710 = vrcp.pop %v657
      %v711 = vmul.f32 1.0, %v710
      %v712 = vrcp.pop %v658
      %v713 = vmul.f32 1.0, %v712
      %v714 = vrcp.pop %v659
      %v715 = vmul.f32 1.0, %v714
      %v716 = vrcp.pop %v660
      %v717 = vmul.f32 1.0, %v716
      %v718 = vrcp.pop %v661
      %v719 = vmul.f32 1.0, %v718
      %v720 = vrcp.pop %v662
      %v721 = vmul.f32 1.0, %v720
      %v722 = vrcp.pop %v663
      %v723 = vmul.f32 1.0, %v722
      %v724 = vrcp.pop %v664
      %v725 = vmul.f32 1.0, %v724
      %v726 = vrcp.pop %v665
      %v727 = vmul.f32 1.0, %v726
      %v728 = vrcp.pop %v666
      %v729 = vmul.f32 1.0, %v728
      %v730 = vrcp.pop %v667
      %v731 = vmul.f32 1.0, %v730
      %764 = vrot.lane.b32.xlu0 %v669, 64
      %v765 = vpop.permute.xlu0 %764
      %766 = vrot.lane.b32.xlu0 %v671, 64
      %v767 = vpop.permute.xlu0 %766
      %768 = vrot.lane.b32.xlu0 %v673, 64
      %v769 = vpop.permute.xlu0 %768
      %770 = vrot.lane.b32.xlu0 %v675, 64
      %v771 = vpop.permute.xlu0 %770
      %772 = vrot.lane.b32.xlu0 %v677, 64
      %v773 = vpop.permute.xlu0 %772
      %774 = vrot.lane.b32.xlu0 %v679, 64
      %v775 = vpop.permute.xlu0 %774
      %776 = vrot.lane.b32.xlu0 %v681, 64
      %v777 = vpop.permute.xlu0 %776
      %778 = vrot.lane.b32.xlu0 %v683, 64
      %v779 = vpop.permute.xlu0 %778
      %780 = vrot.lane.b32.xlu0 %v685, 64
      %v781 = vpop.permute.xlu0 %780
      %782 = vrot.lane.b32.xlu0 %v687, 64
      %v783 = vpop.permute.xlu0 %782
      %784 = vrot.lane.b32.xlu0 %v689, 64
      %v785 = vpop.permute.xlu0 %784
      %786 = vrot.lane.b32.xlu0 %v691, 64
      %v787 = vpop.permute.xlu0 %786
      %788 = vrot.lane.b32.xlu0 %v693, 64
      %v789 = vpop.permute.xlu0 %788
      %790 = vrot.lane.b32.xlu0 %v695, 64
      %v791 = vpop.permute.xlu0 %790
      %792 = vrot.lane.b32.xlu0 %v697, 64
      %v793 = vpop.permute.xlu0 %792
      %794 = vrot.lane.b32.xlu0 %v699, 64
      %v795 = vpop.permute.xlu0 %794
      %796 = vrot.lane.b32.xlu0 %v701, 64
      %v797 = vpop.permute.xlu0 %796
      %798 = vrot.lane.b32.xlu0 %v703, 64
      %v799 = vpop.permute.xlu0 %798
      %800 = vrot.lane.b32.xlu0 %v705, 64
      %v801 = vpop.permute.xlu0 %800
      %802 = vrot.lane.b32.xlu0 %v707, 64
      %v803 = vpop.permute.xlu0 %802
      %804 = vrot.lane.b32.xlu0 %v709, 64
      %v805 = vpop.permute.xlu0 %804
      %806 = vrot.lane.b32.xlu0 %v711, 64
      %v807 = vpop.permute.xlu0 %806
      %808 = vrot.lane.b32.xlu0 %v713, 64
      %v809 = vpop.permute.xlu0 %808
      %810 = vrot.lane.b32.xlu0 %v715, 64
      %v811 = vpop.permute.xlu0 %810
      %812 = vrot.lane.b32.xlu0 %v717, 64
      %v813 = vpop.permute.xlu0 %812
      %814 = vrot.lane.b32.xlu0 %v719, 64
      %v815 = vpop.permute.xlu0 %814
      %816 = vrot.lane.b32.xlu0 %v721, 64
      %v817 = vpop.permute.xlu0 %816
      %818 = vrot.lane.b32.xlu0 %v723, 64
      %v819 = vpop.permute.xlu0 %818
      %820 = vrot.lane.b32.xlu0 %v725, 64
      %v821 = vpop.permute.xlu0 %820
      %822 = vrot.lane.b32.xlu0 %v727, 64
      %v823 = vpop.permute.xlu0 %822
      %824 = vrot.lane.b32.xlu0 %v729, 64
      %v825 = vpop.permute.xlu0 %824
      %826 = vrot.lane.b32.xlu0 %v731, 64
      %v827 = vpop.permute.xlu0 %826
      %v860 = vmul.f32 %v508, %v765
      %v861 = vmul.f32 %v509, %v767
      %v862 = vmul.f32 %v510, %v769
      %v863 = vmul.f32 %v511, %v771
      %v864 = vmul.f32 %v512, %v773
      %v865 = vmul.f32 %v513, %v775
      %v866 = vmul.f32 %v514, %v777
      %v867 = vmul.f32 %v515, %v779
      %v868 = vmul.f32 %v516, %v781
      %v869 = vmul.f32 %v517, %v783
      %v870 = vmul.f32 %v518, %v785
      %v871 = vmul.f32 %v519, %v787
      %v872 = vmul.f32 %v520, %v789
      %v873 = vmul.f32 %v521, %v791
      %v874 = vmul.f32 %v522, %v793
      %v875 = vmul.f32 %v523, %v795
      %v876 = vmul.f32 %v524, %v797
      %v877 = vmul.f32 %v525, %v799
      %v878 = vmul.f32 %v526, %v801
      %v879 = vmul.f32 %v527, %v803
      %v880 = vmul.f32 %v528, %v805
      %v881 = vmul.f32 %v529, %v807
      %v882 = vmul.f32 %v530, %v809
      %v883 = vmul.f32 %v531, %v811
      %v884 = vmul.f32 %v532, %v813
      %v885 = vmul.f32 %v533, %v815
      %v886 = vmul.f32 %v534, %v817
      %v887 = vmul.f32 %v535, %v819
      %v888 = vmul.f32 %v536, %v821
      %v889 = vmul.f32 %v537, %v823
      %v890 = vmul.f32 %v538, %v825
      %v891 = vmul.f32 %v539, %v827
      %v892 = vld [vmem:[%s3] sm:$0x1]
      %v893 = vld [vmem:[#allocation2] sm:$0x1]
      %895 = vset.pattern.permute.xlu0 0
      %896 = vperm.xlu0 %895, %v893
      %v897 = vpop.permute.xlu0 %896
      %v899 = vlaneseq
      %v900 = vshrl.u32 %v899, 7
      %v901 = vsub.s32 0, %v900
      %v902 = vrot.slane %v897, %v901
      %vm903 = vcmask 523264
      %v905 = vsel %vm903, %v892, 0
      %v908 = vsel %vm903, %v860, 0
      %v911 = vsel %vm903, %v861, 0
      %v914 = vsel %vm903, %v862, 0
      %v917 = vsel %vm903, %v863, 0
      %v920 = vsel %vm903, %v864, 0
      %v923 = vsel %vm903, %v865, 0
      %v926 = vsel %vm903, %v866, 0
      %v929 = vsel %vm903, %v867, 0
      %v932 = vsel %vm903, %v868, 0
      %v935 = vsel %vm903, %v869, 0
      %v938 = vsel %vm903, %v870, 0
      %v941 = vsel %vm903, %v871, 0
      %v944 = vsel %vm903, %v872, 0
      %v947 = vsel %vm903, %v873, 0
      %v950 = vsel %vm903, %v874, 0
      %v953 = vsel %vm903, %v875, 0
      %v956 = vsel %vm903, %v876, 0
      %v959 = vsel %vm903, %v877, 0
      %v962 = vsel %vm903, %v878, 0
      %v965 = vsel %vm903, %v879, 0
      %v968 = vsel %vm903, %v880, 0
      %v971 = vsel %vm903, %v881, 0
      %v974 = vsel %vm903, %v882, 0
      %v977 = vsel %vm903, %v883, 0
      %v980 = vsel %vm903, %v884, 0
      %v983 = vsel %vm903, %v885, 0
      %v986 = vsel %vm903, %v886, 0
      %v989 = vsel %vm903, %v887, 0
      %v992 = vsel %vm903, %v888, 0
      %v995 = vsel %vm903, %v889, 0
      %v998 = vsel %vm903, %v890, 0
      %v1001 = vsel %vm903, %v891, 0
      %1003 = vmatprep.subr.mxu0 0.0
      %1004 = vmatpush1.xpose.msra.mxu0 %v908
      %1005 = vmatprep.subr.mxu0 0.0
      %1006 = vmatpush1.xpose.msra.mxu0 %v911
      %1007 = vmatprep.subr.mxu0 0.0
      %1008 = vmatpush1.xpose.msra.mxu0 %v914
      %1009 = vmatprep.subr.mxu0 0.0
      %1010 = vmatpush1.xpose.msra.mxu0 %v917
      %1011 = vmatprep.subr.mxu0 0.0
      %1012 = vmatpush1.xpose.msra.mxu0 %v920
      %1013 = vmatprep.subr.mxu0 0.0
      %1014 = vmatpush1.xpose.msra.mxu0 %v923
      %1015 = vmatprep.subr.mxu0 0.0
      %1016 = vmatpush1.xpose.msra.mxu0 %v926
      %1017 = vmatprep.subr.mxu0 0.0
      %1018 = vmatpush1.xpose.msra.mxu0 %v929
      %1019 = vmatprep.subr.mxu0 0.0
      %1020 = vmatpush1.xpose.msra.mxu0 %v932
      %1021 = vmatprep.subr.mxu0 0.0
      %1022 = vmatpush1.xpose.msra.mxu0 %v935
      %1023 = vmatprep.subr.mxu0 0.0
      %1024 = vmatpush1.xpose.msra.mxu0 %v938
      %1025 = vmatprep.subr.mxu0 0.0
      %1026 = vmatpush1.xpose.msra.mxu0 %v941
      %1027 = vmatprep.subr.mxu0 0.0
      %1028 = vmatpush1.xpose.msra.mxu0 %v944
      %1029 = vmatprep.subr.mxu0 0.0
      %1030 = vmatpush1.xpose.msra.mxu0 %v947
      %1031 = vmatprep.subr.mxu0 0.0
      %1032 = vmatpush1.xpose.msra.mxu0 %v950
      %1033 = vmatprep.subr.mxu0 0.0
      %1034 = vmatpush1.xpose.msra.mxu0 %v953
      %1035 = vmatprep.subr.mxu0 0.0
      %1036 = vmatpush1.xpose.msra.mxu0 %v956
      %1037 = vmatprep.subr.mxu0 0.0
      %1038 = vmatpush1.xpose.msra.mxu0 %v959
      %1039 = vmatprep.subr.mxu0 0.0
      %1040 = vmatpush1.xpose.msra.mxu0 %v962
      %1041 = vmatprep.subr.mxu0 0.0
      %1042 = vmatpush1.xpose.msra.mxu0 %v965
      %1043 = vmatprep.subr.mxu0 0.0
      %1044 = vmatpush1.xpose.msra.mxu0 %v968
      %1045 = vmatprep.subr.mxu0 0.0
      %1046 = vmatpush1.xpose.msra.mxu0 %v971
      %1047 = vmatprep.subr.mxu0 0.0
      %1048 = vmatpush1.xpose.msra.mxu0 %v974
      %1049 = vmatprep.subr.mxu0 0.0
      %1050 = vmatpush1.xpose.msra.mxu0 %v977
      %1051 = vmatprep.subr.mxu0 0.0
      %1052 = vmatpush1.xpose.msra.mxu0 %v980
      %1053 = vmatprep.subr.mxu0 0.0
      %1054 = vmatpush1.xpose.msra.mxu0 %v983
      %1055 = vmatprep.subr.mxu0 0.0
      %1056 = vmatpush1.xpose.msra.mxu0 %v986
      %1057 = vmatprep.subr.mxu0 0.0
      %1058 = vmatpush1.xpose.msra.mxu0 %v989
      %1059 = vmatprep.subr.mxu0 0.0
      %1060 = vmatpush1.xpose.msra.mxu0 %v992
      %1061 = vmatprep.subr.mxu0 0.0
      %1062 = vmatpush1.xpose.msra.mxu0 %v995
      %1063 = vmatprep.subr.mxu0 0.0
      %1064 = vmatpush1.xpose.msra.mxu0 %v998
      %1065 = vmatprep.subr.mxu0 0.0
      %1066 = vmatpush1.xpose.msra.mxu0 %v1001
      %1067 = vmatprep.mubr.f32.mxu0 0.0
      %1068 = vmatmul.mubr.f32.gmra.mrb[0].mxu0 %v905
      %v1069 = vpop.f32.mrb[0].mxu0
      %v1070 = vadd.f32 %v902, %v1069
      %v1071 = vpop.f32.mrb[0].mxu0
      %v1072 = vadd.f32 %v902, %v1071
      %1073 = vdwg.mxu0
      %v1076 = vcombine.low %v1070, %v1072
      %v1078 = vunpack.c.l.s4 1966171168
      %v1079 = vunpack.c.0.s8 %v1078
      %v1080 = vlaneseq
      %v1081 = vshrl.u32 %v1080, 7
      %v1082 = vsub.s32 %v1079, %v1081
      %v1083 = vrot.slane %v1076, %v1082
      %v1085 = vunpack.c.l.s4 1966171168
      %v1086 = vunpack.c.0.s8 %v1085
      %v1087 = vlaneseq
      %v1088 = vshrl.u32 %v1087, 7
      %v1089 = vsub.s32 %v1086, %v1088
      %v1090 = vrot.slane %v1083, %v1089
      %v1092 = vlaneseq
      %vm1093 = vcmp.ge.s32.totalorder %v1092, 0
      %vm1094 = vcmp.lt.s32.totalorder %v1092, 256
      %vm1095 = vmand %vm1093, %vm1094
      %1096 = vst.msk [vmem:[%s226] sm:$0x3] %vm1095, %v1090
      %s1097 = smul.u32 2, %s18
      %p1098 = scmp.lt.s32.totalorder %s1097, 3
      %s1099 = scalar_select %p1098, %s1097, 3
      %s1100 = scalar_lea.vmem %s5, %s1099
      // Predicated region
      $region41: #{attn_net_gated_forward.1} parent=39 // pred_check
        %p1101 = pneg %p146
      $region42: #{attn_net_gated_forward.1} parent=39 // pred_check_branch
        %1103 = sbr.rel (%p1101) target = $region44
      $region43: #{attn_net_gated_forward.1} parent=39 // pred_region
        %s1104 = smul.u32 2, %s18
      $region44: #{attn_net_gated_forward.1} parent=39 // pred_fallthru
        _
    $region40: #{attn_net_gated_forward.1} parent=5 // pred_fallthru
      _
    %p1105 = scmp.le.s32.totalorder 2, %s13
    // Predicated region
    $region45: #{attn_net_gated_forward.1} parent=5 // pred_check
      %p1106 = pneg %p1105
    $region46: #{attn_net_gated_forward.1} parent=5 // pred_check_branch
      %1108 = sbr.rel (%p1106) target = $region48
    $region47: #{attn_net_gated_forward.1} parent=5 // pred_region
      %s1109 = ssub.s32 %s13, 2
      // Predicated region
      $region49: #{attn_net_gated_forward.1} parent=47 // pred_check
        %p1110 = pneg %p152
      $region50: #{attn_net_gated_forward.1} parent=47 // pred_check_branch
        %1112 = sbr.rel (%p1110) target = $region52
      $region51: #{attn_net_gated_forward.1} parent=47 // pred_region
        %s1113 = smul.u32 2, %s19
        %p1114 = scmp.lt.s32.totalorder %s1113, 3
        %s1115 = scalar_select %p1114, %s1113, 3
        %s1116 = scalar_lea.vmem %s5, %s1115
      $region52: #{attn_net_gated_forward.1} parent=47 // pred_fallthru
        _
    $region48: #{attn_net_gated_forward.1} parent=5 // pred_fallthru
      _
  $region6: #{attn_net_gated_forward.1} parent=0 // loop_footer
    %s17 = sadd.s32 1, %s13
  $region7: #{attn_net_gated_forward.1} parent=0 // loop_footer_branch
    %12 = sbr.rel target = $region3
  $region8: #{attn_net_gated_forward.1} parent=0 // loop_exit
    _

</llo_original>
